<compile_context>
chip_gen: v7x
topology: tpu7x:2x2x1
jax: 0.10.0
libtpu: 0.0.40
codegen_flags: <defaults>
</compile_context>

<pallas_src>
import jax
import jax.numpy as jnp
from jax.experimental import pallas as pl
from jax.experimental.pallas import tpu as pltpu


# ----------------------------------------------------------------------------
# shared in-kernel helper: 3x3 conv on parity-split rows + BN statistics
# ----------------------------------------------------------------------------
def _conv_parity_store(ev, od, band_ref, cbias_ref, conv_ref, stats_ref):
    """ev/od: (H0, W*Cin) even/odd rows of the input image (already activated).

    Writes conv output (parity-split, (1,2,H0,W*Cout) block) and per-image
    [sum; sum-of-squares] stats ((1,2,W*Cout) block).
    """
    H0, WCin = ev.shape
    zrow = jnp.zeros((1, WCin), jnp.float32)
    od_prev = jnp.concatenate([zrow, od[: H0 - 1]], axis=0)   # row 2t-1 (O[t-1])
    ev_next = jnp.concatenate([ev[1:], zrow], axis=0)         # row 2t+2 (E[t+1])

    b0 = band_ref[0]
    b1 = band_ref[1]
    b2 = band_ref[2]
    cb = cbias_ref[...]

    # out[2t]   = a[2t-1]@B0 + a[2t]@B1 + a[2t+1]@B2 + bias
    y_even = (jnp.dot(od_prev, b0, preferred_element_type=jnp.float32)
              + jnp.dot(ev, b1, preferred_element_type=jnp.float32)
              + jnp.dot(od, b2, preferred_element_type=jnp.float32) + cb)
    # out[2t+1] = a[2t]@B0 + a[2t+1]@B1 + a[2t+2]@B2 + bias
    y_odd = (jnp.dot(ev, b0, preferred_element_type=jnp.float32)
             + jnp.dot(od, b1, preferred_element_type=jnp.float32)
             + jnp.dot(ev_next, b2, preferred_element_type=jnp.float32) + cb)

    conv_ref[0, 0] = y_even
    conv_ref[0, 1] = y_odd

    # Per-image partial BN statistics (lane layout (w, c); W-fold done outside).
    s = jnp.sum(y_even, axis=0, keepdims=True) + jnp.sum(y_odd, axis=0, keepdims=True)
    ss = (jnp.sum(y_even * y_even, axis=0, keepdims=True)
          + jnp.sum(y_odd * y_odd, axis=0, keepdims=True))
    stats_ref[0] = jnp.concatenate([s, ss], axis=0)


# ----------------------------------------------------------------------------
# kernel 1: fused ConvTranspose2d(2x2, s=2) prologue -> Conv2d(3x3) + stats
# ----------------------------------------------------------------------------
def _up_conv_kernel(x_ref, rup_ref, ubias_ref, band_ref, cbias_ref,
                    conv_ref, stats_ref):
    # x_ref    : (1, H0, W0*C)        original image, lanes = (w, c)
    # rup_ref  : (2, W0*C, W*C)       di-indexed upsample RHS (block-diagonal)
    # ubias_ref: (1, W*C)
    # band_ref : (3, W*Cin, W*Cout)   kh-indexed banded conv RHS
    # cbias_ref: (1, W*Cout)
    # conv_ref : (1, 2, H0, W*Cout)   raw conv output, parity-split rows
    # stats_ref: (1, 2, W*Cout)       per-image [sum; sum of squares]
    x = x_ref[0]
    ub = ubias_ref[...]
    # ConvTranspose2d(k=2,s=2) has no overlap: a per-pixel C -> 2*W*C linear.
    ev = jnp.dot(x, rup_ref[0], preferred_element_type=jnp.float32) + ub  # rows 2t
    od = jnp.dot(x, rup_ref[1], preferred_element_type=jnp.float32) + ub  # rows 2t+1
    _conv_parity_store(ev, od, band_ref, cbias_ref, conv_ref, stats_ref)


# ----------------------------------------------------------------------------
# kernel 2: fused BN+ReLU prologue -> Conv2d(3x3) + stats
# ----------------------------------------------------------------------------
def _bn_conv_kernel(a_ref, scale_ref, shift_ref, band_ref, cbias_ref,
                    conv_ref, stats_ref):
    # a_ref: (1, 2, H0, W*Cin) raw (pre-BN) conv output of the previous layer.
    sc = scale_ref[...]
    sh = shift_ref[...]
    ev = jnp.maximum(a_ref[0, 0] * sc + sh, 0.0)
    od = jnp.maximum(a_ref[0, 1] * sc + sh, 0.0)
    _conv_parity_store(ev, od, band_ref, cbias_ref, conv_ref, stats_ref)


# ----------------------------------------------------------------------------
# kernel 3: final BN+ReLU apply (lane-dense FMA)
# ----------------------------------------------------------------------------
def _bn_relu_kernel(x_ref, scale_ref, shift_ref, o_ref):
    o_ref[...] = jnp.maximum(x_ref[...] * scale_ref[...] + shift_ref[...], 0.0)


def _row_tile(rows, width, bytes_per=4, budget=2 << 20):
    """Single full-extent block when small; otherwise largest tile <= budget."""
    if rows * width * bytes_per <= budget:
        return rows
    t = max(8, (budget // (width * bytes_per)) // 8 * 8)
    while rows % t:
        t -= 8
    return max(t, 8)


# ----------------------------------------------------------------------------
# wrapper-side parameter packing
# ----------------------------------------------------------------------------
def _upsample_rhs(w_up, b_up, W0):
    """rhs[di][(j*C+ci), (jo*C+c)] = w_up[ci,c,di,dj] where jo = 2j+dj."""
    C = w_up.shape[0]
    W = 2 * W0
    jidx = jnp.arange(W0)
    P = jnp.zeros((2, W0, W), jnp.float32)
    P = P.at[0, jidx, 2 * jidx].set(1.0)
    P = P.at[1, jidx, 2 * jidx + 1].set(1.0)
    w = w_up.astype(jnp.float32)
    rhs = jnp.stack(
        [jnp.einsum('dab,iod->aibo', P, w[:, :, di, :]).reshape(W0 * C, W * C)
         for di in range(2)], axis=0)
    bias_row = jnp.tile(b_up.astype(jnp.float32), (W,)).reshape(1, W * C)
    return rhs, bias_row


def _band_rhs(w, W):
    """Banded conv RHS per kh: band[kh][(wi*Cin+ci),(wo*Cout+co)] = w[co,ci,kh,wi-wo+1]."""
    Cout, Cin = w.shape[0], w.shape[1]
    w_hwio = jnp.transpose(w.astype(jnp.float32), (2, 3, 1, 0))       # (kh,kw,ci,co)
    S = jnp.stack([jnp.eye(W, k=1 - kw, dtype=jnp.float32) for kw in range(3)], axis=0)
    band = jnp.stack(
        [jnp.einsum('kab,kic->aibc', S, w_hwio[kh]).reshape(W * Cin, W * Cout)
         for kh in range(3)], axis=0)
    return band


def _bn_scale_shift(stats, gamma, beta, count, W, Cout, eps=1e-5):
    """Fold per-image (sum, sumsq) into BN scale/shift rows (lane layout (w,c)).

    Note: var = E[x^2] - E[x]^2 in f32; adequate at these scales (see review).
    """
    s = jnp.sum(stats[:, 0, :], axis=0).reshape(W, Cout).sum(axis=0)
    ss = jnp.sum(stats[:, 1, :], axis=0).reshape(W, Cout).sum(axis=0)
    mean = s / count
    var = ss / count - mean * mean
    scale = gamma.astype(jnp.float32) * jax.lax.rsqrt(var + eps)
    shift = beta.astype(jnp.float32) - mean * scale
    scale_row = jnp.tile(scale, (W,)).reshape(1, W * Cout)
    shift_row = jnp.tile(shift, (W,)).reshape(1, W * Cout)
    return scale_row, shift_row


# ----------------------------------------------------------------------------
# gt_UpBlock forward (NCHW in / NCHW out)
# ----------------------------------------------------------------------------
def gt_upblock_forward(x_nchw, params, eps=1e-5):
    w_up, b_up, conv_layers = params
    N, C, H0, W0 = x_nchw.shape
    H, W = 2 * H0, 2 * W0
    count = N * H * W

    # NCHW -> (N, H0, W0*C) lane-dense slab (tiny XLA transpose of the input).
    x2d = jnp.transpose(x_nchw, (0, 2, 3, 1)).reshape(N, H0, W0 * C).astype(jnp.float32)

    rhs_up, ubias_row = _upsample_rhs(w_up, b_up, W0)

    # ---- layer 1: fused upsample + conv3x3 + stats -------------------------
    w1, b1, g1, beta1 = conv_layers[0]
    Cout = w1.shape[0]
    band = _band_rhs(w1, W)
    cbias = jnp.tile(b1.astype(jnp.float32), (W,)).reshape(1, W * Cout)

    conv_raw, stats = pl.pallas_call(
        _up_conv_kernel,
        out_shape=(jax.ShapeDtypeStruct((N, 2, H0, W * Cout), jnp.float32),
                   jax.ShapeDtypeStruct((N, 2, W * Cout), jnp.float32)),
        grid=(N,),
        in_specs=[
            pl.BlockSpec((1, H0, W0 * C), lambda n: (n, 0, 0)),
            pl.BlockSpec((2, W0 * C, W * C), lambda n: (0, 0, 0)),
            pl.BlockSpec((1, W * C), lambda n: (0, 0)),
            pl.BlockSpec((3, W * C, W * Cout), lambda n: (0, 0, 0)),
            pl.BlockSpec((1, W * Cout), lambda n: (0, 0)),
        ],
        out_specs=(pl.BlockSpec((1, 2, H0, W * Cout), lambda n: (n, 0, 0, 0)),
                   pl.BlockSpec((1, 2, W * Cout), lambda n: (n, 0, 0))),
        compiler_params=pltpu.CompilerParams(dimension_semantics=("parallel",)),
    )(x2d, rhs_up, ubias_row, band, cbias)
    scale_row, shift_row = _bn_scale_shift(stats, g1, beta1, count, W, Cout, eps)
    Cin = Cout

    # ---- layers 2..nb_Conv: fused BN+ReLU prologue + conv3x3 + stats -------
    for (wl, bl, gl, betal) in conv_layers[1:]:
        Cout = wl.shape[0]
        band = _band_rhs(wl, W)
        cbias = jnp.tile(bl.astype(jnp.float32), (W,)).reshape(1, W * Cout)

        conv_raw, stats = pl.pallas_call(
            _bn_conv_kernel,
            out_shape=(jax.ShapeDtypeStruct((N, 2, H0, W * Cout), jnp.float32),
                       jax.ShapeDtypeStruct((N, 2, W * Cout), jnp.float32)),
            grid=(N,),
            in_specs=[
                pl.BlockSpec((1, 2, H0, W * Cin), lambda n: (n, 0, 0, 0)),
                pl.BlockSpec((1, W * Cin), lambda n: (0, 0)),
                pl.BlockSpec((1, W * Cin), lambda n: (0, 0)),
                pl.BlockSpec((3, W * Cin, W * Cout), lambda n: (0, 0, 0)),
                pl.BlockSpec((1, W * Cout), lambda n: (0, 0)),
            ],
            out_specs=(pl.BlockSpec((1, 2, H0, W * Cout), lambda n: (n, 0, 0, 0)),
                       pl.BlockSpec((1, 2, W * Cout), lambda n: (n, 0, 0))),
            compiler_params=pltpu.CompilerParams(dimension_semantics=("parallel",)),
        )(conv_raw, scale_row, shift_row, band, cbias)
        scale_row, shift_row = _bn_scale_shift(stats, gl, betal, count, W, Cout, eps)
        Cin = Cout

    # ---- epilogue: last layer's BN + ReLU on a lane-dense slab -------------
    rows = N * 2 * H0
    width = W * Cin
    TR = _row_tile(rows, width)
    x_flat = conv_raw.reshape(rows, width)            # free view reshape
    y_flat = pl.pallas_call(
        _bn_relu_kernel,
        out_shape=jax.ShapeDtypeStruct((rows, width), jnp.float32),
        grid=(rows // TR,),
        in_specs=[
            pl.BlockSpec((TR, width), lambda r: (r, 0)),
            pl.BlockSpec((1, width), lambda r: (0, 0)),
            pl.BlockSpec((1, width), lambda r: (0, 0)),
        ],
        out_specs=pl.BlockSpec((TR, width), lambda r: (r, 0)),
        compiler_params=pltpu.CompilerParams(dimension_semantics=("parallel",)),
    )(x_flat, scale_row, shift_row)

    # (N, 2, H0, W, Cout) -> NCHW: row index is 2*t + parity.
    y = y_flat.reshape(N, 2, H0, W, Cin)
    return jnp.transpose(y, (0, 4, 2, 1, 3)).reshape(N, Cin, H, W)


# ----------------------------------------------------------------------------
# Pure-JAX reference mirroring the PyTorch forward
# ----------------------------------------------------------------------------
def gt_upblock_reference(x, params):
    w_up, b_up, conv_layers = params
    N, C, H, W = x.shape
    # ConvTranspose2d(k=2, s=2): out[n,o,2i+di,2j+dj] = b[o] + sum_c x[n,c,i,j]*w[c,o,di,dj]
    t = jnp.einsum('ncij,codk->noidjk', x, w_up)
    a = t.reshape(N, w_up.shape[1], 2 * H, 2 * W) + b_up.reshape(1, -1, 1, 1)

    dn = ('NCHW', 'OIHW', 'NCHW')
    for (w, b, gamma, beta) in conv_layers:
        o = jax.lax.conv_general_dilated(a, w, (1, 1), [(1, 1), (1, 1)],
                                         dimension_numbers=dn)
        o = o + b.reshape(1, -1, 1, 1)
        m = o.mean(axis=(0, 2, 3), keepdims=True)
        v = ((o - m) ** 2).mean(axis=(0, 2, 3), keepdims=True)
        o = (o - m) / jnp.sqrt(v + 1e-5) * gamma.reshape(1, -1, 1, 1) \
            + beta.reshape(1, -1, 1, 1)
        a = jnp.maximum(o, 0.0)
    return a


# ----------------------------------------------------------------------------
# parameters (fresh-module defaults: BN gamma=1 / beta=0)
# ----------------------------------------------------------------------------
def make_params(key, in_ch, out_ch, nb_conv):
    ks = jax.random.split(key, 2 + 2 * nb_conv)
    w_up = 0.1 * jax.random.normal(ks[0], (in_ch, in_ch, 2, 2), jnp.float32)
    b_up = 0.1 * jax.random.normal(ks[1], (in_ch,), jnp.float32)
    layers = []
    cin = in_ch
    for l in range(nb_conv):
        w = 0.1 * jax.random.normal(ks[2 + 2 * l], (out_ch, cin, 3, 3), jnp.float32)
        b = 0.1 * jax.random.normal(ks[3 + 2 * l], (out_ch,), jnp.float32)
        gamma = jnp.ones((out_ch,), jnp.float32)   # nn.BatchNorm2d default weight
        beta = jnp.zeros((out_ch,), jnp.float32)   # nn.BatchNorm2d default bias
        layers.append((w, b, gamma, beta))
        cin = out_ch
    # TODO(synk): BatchNorm running_mean/running_var momentum updates are
    # stateful training bookkeeping and not part of the forward output.
    return (w_up, b_up, tuple(layers))


if __name__ == "__main__":
    key = jax.random.PRNGKey(0)
    k_x, k_p = jax.random.split(key)

    N, C_in, H, W = 2, 4, 16, 16
    C_out, nb_conv = 4, 2
    x = jax.random.normal(k_x, (N, C_in, H, W), jnp.float32)
    params = make_params(k_p, C_in, C_out, nb_conv)

    out = jax.block_until_ready(gt_upblock_forward(x, params))
    ref = jax.block_until_ready(gt_upblock_reference(x, params))

    assert out.shape == (N, C_out, 2 * H, 2 * W), out.shape
    max_err = float(jnp.max(jnp.abs(out - ref)))
    assert jnp.allclose(out, ref, rtol=1e-3, atol=1e-3), max_err
    print("KERNEL_OK")
</pallas_src>

<mosaic_0001>
module attributes {stable_mosaic.version = 11 : i64} {
  func.func @_up_conv_kernel(%arg0: i32, %arg1: memref<1x16x64xf32, #tpu.memory_space<vmem>>, %arg2: memref<2x64x128xf32, #tpu.memory_space<vmem>>, %arg3: memref<1x128xf32, #tpu.memory_space<vmem>>, %arg4: memref<3x128x128xf32, #tpu.memory_space<vmem>>, %arg5: memref<1x128xf32, #tpu.memory_space<vmem>>, %arg6: memref<1x2x16x128xf32, #tpu.memory_space<vmem>>, %arg7: memref<1x2x128xf32, #tpu.memory_space<vmem>>) attributes {dimension_semantics = [#tpu.dimension_semantics<parallel>], iteration_bounds = array<i64: 2>, scalar_prefetch = 0 : i64, scratch_operands = 0 : i64, tpu.core_type = #tpu.core_type<tc>, window_params = [{transform_indices = @transform_0, window_bounds = array<i64: 1, 16, 64>}, {pipeline_mode = #tpu.pipeline_mode<synchronous>, transform_indices = @transform_1, window_bounds = array<i64: 2, 64, 128>}, {pipeline_mode = #tpu.pipeline_mode<synchronous>, transform_indices = @transform_2, window_bounds = array<i64: 1, 128>}, {pipeline_mode = #tpu.pipeline_mode<synchronous>, transform_indices = @transform_3, window_bounds = array<i64: 3, 128, 128>}, {pipeline_mode = #tpu.pipeline_mode<synchronous>, transform_indices = @transform_4, window_bounds = array<i64: 1, 128>}, {transform_indices = @transform_5, window_bounds = array<i64: 1, 2, 16, 128>}, {transform_indices = @transform_6, window_bounds = array<i64: 1, 2, 128>}]} {
    %c0 = arith.constant 0 : index
    %c0_0 = arith.constant 0 : index
    %c0_1 = arith.constant 0 : index
    %0 = vector.load %arg1[%c0, %c0_0, %c0_1] : memref<1x16x64xf32, #tpu.memory_space<vmem>>, vector<1x16x64xf32>
    %1 = vector.shape_cast %0 : vector<1x16x64xf32> to vector<16x64xf32>
    %c0_2 = arith.constant 0 : index
    %c0_3 = arith.constant 0 : index
    %2 = vector.load %arg3[%c0_2, %c0_3] : memref<1x128xf32, #tpu.memory_space<vmem>>, vector<1x128xf32>
    %c0_4 = arith.constant 0 : index
    %c0_5 = arith.constant 0 : index
    %c0_6 = arith.constant 0 : index
    %3 = vector.load %arg2[%c0_4, %c0_5, %c0_6] : memref<2x64x128xf32, #tpu.memory_space<vmem>>, vector<1x64x128xf32>
    %4 = vector.shape_cast %3 : vector<1x64x128xf32> to vector<64x128xf32>
    %cst = arith.constant dense<0.000000e+00> : vector<16x128xf32>
    %5 = tpu.matmul %1, %4, %cst {dimension_numbers = #tpu.dot_dimension_numbers<[1], [0], [0], [1], [0, 0, 1, 1], [], []>} : vector<16x64xf32>, vector<64x128xf32>, vector<16x128xf32> -> vector<16x128xf32>
    %6 = vector.broadcast %2 : vector<1x128xf32> to vector<16x128xf32>
    %7 = arith.addf %5, %6 : vector<16x128xf32>
    %c1 = arith.constant 1 : index
    %c0_7 = arith.constant 0 : index
    %c0_8 = arith.constant 0 : index
    %8 = vector.load %arg2[%c1, %c0_7, %c0_8] : memref<2x64x128xf32, #tpu.memory_space<vmem>>, vector<1x64x128xf32>
    %9 = vector.shape_cast %8 : vector<1x64x128xf32> to vector<64x128xf32>
    %cst_9 = arith.constant dense<0.000000e+00> : vector<16x128xf32>
    %10 = tpu.matmul %1, %9, %cst_9 {dimension_numbers = #tpu.dot_dimension_numbers<[1], [0], [0], [1], [0, 0, 1, 1], [], []>} : vector<16x64xf32>, vector<64x128xf32>, vector<16x128xf32> -> vector<16x128xf32>
    %11 = vector.broadcast %2 : vector<1x128xf32> to vector<16x128xf32>
    %12 = arith.addf %10, %11 : vector<16x128xf32>
    %cst_10 = arith.constant 0.000000e+00 : f32
    %13 = vector.broadcast %cst_10 : f32 to vector<1x128xf32>
    %14 = vector.extract_strided_slice %12 {offsets = [0, 0], sizes = [15, 128], strides = [1, 1]} : vector<16x128xf32> to vector<15x128xf32>
    %15 = tpu.concatenate %13, %14 in 0 : vector<1x128xf32>, vector<15x128xf32> -> vector<16x128xf32>
    %16 = vector.extract_strided_slice %7 {offsets = [1, 0], sizes = [15, 128], strides = [1, 1]} : vector<16x128xf32> to vector<15x128xf32>
    %17 = tpu.concatenate %16, %13 in 0 : vector<15x128xf32>, vector<1x128xf32> -> vector<16x128xf32>
    %c0_11 = arith.constant 0 : index
    %c0_12 = arith.constant 0 : index
    %c0_13 = arith.constant 0 : index
    %18 = vector.load %arg4[%c0_11, %c0_12, %c0_13] : memref<3x128x128xf32, #tpu.memory_space<vmem>>, vector<1x128x128xf32>
    %19 = vector.shape_cast %18 : vector<1x128x128xf32> to vector<128x128xf32>
    %c1_14 = arith.constant 1 : index
    %c0_15 = arith.constant 0 : index
    %c0_16 = arith.constant 0 : index
    %20 = vector.load %arg4[%c1_14, %c0_15, %c0_16] : memref<3x128x128xf32, #tpu.memory_space<vmem>>, vector<1x128x128xf32>
    %21 = vector.shape_cast %20 : vector<1x128x128xf32> to vector<128x128xf32>
    %c2 = arith.constant 2 : index
    %c0_17 = arith.constant 0 : index
    %c0_18 = arith.constant 0 : index
    %22 = vector.load %arg4[%c2, %c0_17, %c0_18] : memref<3x128x128xf32, #tpu.memory_space<vmem>>, vector<1x128x128xf32>
    %23 = vector.shape_cast %22 : vector<1x128x128xf32> to vector<128x128xf32>
    %c0_19 = arith.constant 0 : index
    %c0_20 = arith.constant 0 : index
    %24 = vector.load %arg5[%c0_19, %c0_20] : memref<1x128xf32, #tpu.memory_space<vmem>>, vector<1x128xf32>
    %cst_21 = arith.constant dense<0.000000e+00> : vector<16x128xf32>
    %25 = tpu.matmul %15, %19, %cst_21 {dimension_numbers = #tpu.dot_dimension_numbers<[1], [0], [0], [1], [0, 0, 1, 1], [], []>} : vector<16x128xf32>, vector<128x128xf32>, vector<16x128xf32> -> vector<16x128xf32>
    %cst_22 = arith.constant dense<0.000000e+00> : vector<16x128xf32>
    %26 = tpu.matmul %7, %21, %cst_22 {dimension_numbers = #tpu.dot_dimension_numbers<[1], [0], [0], [1], [0, 0, 1, 1], [], []>} : vector<16x128xf32>, vector<128x128xf32>, vector<16x128xf32> -> vector<16x128xf32>
    %27 = arith.addf %25, %26 : vector<16x128xf32>
    %cst_23 = arith.constant dense<0.000000e+00> : vector<16x128xf32>
    %28 = tpu.matmul %12, %23, %cst_23 {dimension_numbers = #tpu.dot_dimension_numbers<[1], [0], [0], [1], [0, 0, 1, 1], [], []>} : vector<16x128xf32>, vector<128x128xf32>, vector<16x128xf32> -> vector<16x128xf32>
    %29 = arith.addf %27, %28 : vector<16x128xf32>
    %30 = vector.broadcast %24 : vector<1x128xf32> to vector<16x128xf32>
    %31 = arith.addf %29, %30 : vector<16x128xf32>
    %cst_24 = arith.constant dense<0.000000e+00> : vector<16x128xf32>
    %32 = tpu.matmul %7, %19, %cst_24 {dimension_numbers = #tpu.dot_dimension_numbers<[1], [0], [0], [1], [0, 0, 1, 1], [], []>} : vector<16x128xf32>, vector<128x128xf32>, vector<16x128xf32> -> vector<16x128xf32>
    %cst_25 = arith.constant dense<0.000000e+00> : vector<16x128xf32>
    %33 = tpu.matmul %12, %21, %cst_25 {dimension_numbers = #tpu.dot_dimension_numbers<[1], [0], [0], [1], [0, 0, 1, 1], [], []>} : vector<16x128xf32>, vector<128x128xf32>, vector<16x128xf32> -> vector<16x128xf32>
    %34 = arith.addf %32, %33 : vector<16x128xf32>
    %cst_26 = arith.constant dense<0.000000e+00> : vector<16x128xf32>
    %35 = tpu.matmul %17, %23, %cst_26 {dimension_numbers = #tpu.dot_dimension_numbers<[1], [0], [0], [1], [0, 0, 1, 1], [], []>} : vector<16x128xf32>, vector<128x128xf32>, vector<16x128xf32> -> vector<16x128xf32>
    %36 = arith.addf %34, %35 : vector<16x128xf32>
    %37 = vector.broadcast %24 : vector<1x128xf32> to vector<16x128xf32>
    %38 = arith.addf %36, %37 : vector<16x128xf32>
    %c0_27 = arith.constant 0 : index
    %c0_28 = arith.constant 0 : index
    %c0_29 = arith.constant 0 : index
    %c0_30 = arith.constant 0 : index
    %39 = vector.load %arg6[%c0_27, %c0_28, %c0_29, %c0_30] : memref<1x2x16x128xf32, #tpu.memory_space<vmem>>, vector<1x1x16x128xf32>
    %40 = vector.shape_cast %39 : vector<1x1x16x128xf32> to vector<16x128xf32>
    %41 = vector.shape_cast %31 : vector<16x128xf32> to vector<1x1x16x128xf32>
    tpu.vector_store %arg6[%c0_27, %c0_28, %c0_29, %c0_30], %41 {strides = array<i32>} : memref<1x2x16x128xf32, #tpu.memory_space<vmem>>, vector<1x1x16x128xf32>,
    %c0_31 = arith.constant 0 : index
    %c1_32 = arith.constant 1 : index
    %c0_33 = arith.constant 0 : index
    %c0_34 = arith.constant 0 : index
    %42 = vector.load %arg6[%c0_31, %c1_32, %c0_33, %c0_34] : memref<1x2x16x128xf32, #tpu.memory_space<vmem>>, vector<1x1x16x128xf32>
    %43 = vector.shape_cast %42 : vector<1x1x16x128xf32> to vector<16x128xf32>
    %44 = vector.shape_cast %38 : vector<16x128xf32> to vector<1x1x16x128xf32>
    tpu.vector_store %arg6[%c0_31, %c1_32, %c0_33, %c0_34], %44 {strides = array<i32>} : memref<1x2x16x128xf32, #tpu.memory_space<vmem>>, vector<1x1x16x128xf32>,
    %cst_35 = arith.constant dense<0.000000e+00> : vector<128xf32>
    %45 = vector.multi_reduction <add>, %31, %cst_35 [0] : vector<16x128xf32> to vector<128xf32>
    %46 = vector.shape_cast %45 : vector<128xf32> to vector<1x128xf32>
    %cst_36 = arith.constant dense<0.000000e+00> : vector<128xf32>
    %47 = vector.multi_reduction <add>, %38, %cst_36 [0] : vector<16x128xf32> to vector<128xf32>
    %48 = vector.shape_cast %47 : vector<128xf32> to vector<1x128xf32>
    %49 = arith.addf %46, %48 : vector<1x128xf32>
    %50 = arith.mulf %31, %31 : vector<16x128xf32>
    %cst_37 = arith.constant dense<0.000000e+00> : vector<128xf32>
    %51 = vector.multi_reduction <add>, %50, %cst_37 [0] : vector<16x128xf32> to vector<128xf32>
    %52 = vector.shape_cast %51 : vector<128xf32> to vector<1x128xf32>
    %53 = arith.mulf %38, %38 : vector<16x128xf32>
    %cst_38 = arith.constant dense<0.000000e+00> : vector<128xf32>
    %54 = vector.multi_reduction <add>, %53, %cst_38 [0] : vector<16x128xf32> to vector<128xf32>
    %55 = vector.shape_cast %54 : vector<128xf32> to vector<1x128xf32>
    %56 = arith.addf %52, %55 : vector<1x128xf32>
    %57 = tpu.concatenate %49, %56 in 0 : vector<1x128xf32>, vector<1x128xf32> -> vector<2x128xf32>
    %c0_39 = arith.constant 0 : index
    %c0_40 = arith.constant 0 : index
    %c0_41 = arith.constant 0 : index
    %58 = vector.load %arg7[%c0_39, %c0_40, %c0_41] : memref<1x2x128xf32, #tpu.memory_space<vmem>>, vector<1x2x128xf32>
    %59 = vector.shape_cast %58 : vector<1x2x128xf32> to vector<2x128xf32>
    %60 = vector.shape_cast %57 : vector<2x128xf32> to vector<1x2x128xf32>
    tpu.vector_store %arg7[%c0_39, %c0_40, %c0_41], %60 {strides = array<i32>} : memref<1x2x128xf32, #tpu.memory_space<vmem>>, vector<1x2x128xf32>,
    return
  }
  func.func @transform_0(%arg0: i32) -> (i32, i32, i32) {
    %c0_i32 = arith.constant 0 : i32
    %c0_i32_0 = arith.constant 0 : i32
    %c0_i32_1 = arith.constant 0 : i32
    return %arg0, %c0_i32, %c0_i32_0 : i32, i32, i32
  }
  func.func @transform_1(%arg0: i32) -> (i32, i32, i32) {
    %c0_i32 = arith.constant 0 : i32
    %c0_i32_0 = arith.constant 0 : i32
    %c0_i32_1 = arith.constant 0 : i32
    %c0_i32_2 = arith.constant 0 : i32
    return %c0_i32, %c0_i32_0, %c0_i32_1 : i32, i32, i32
  }
  func.func @transform_2(%arg0: i32) -> (i32, i32) {
    %c0_i32 = arith.constant 0 : i32
    %c0_i32_0 = arith.constant 0 : i32
    %c0_i32_1 = arith.constant 0 : i32
    return %c0_i32, %c0_i32_0 : i32, i32
  }
  func.func @transform_3(%arg0: i32) -> (i32, i32, i32) {
    %c0_i32 = arith.constant 0 : i32
    %c0_i32_0 = arith.constant 0 : i32
    %c0_i32_1 = arith.constant 0 : i32
    %c0_i32_2 = arith.constant 0 : i32
    return %c0_i32, %c0_i32_0, %c0_i32_1 : i32, i32, i32
  }
  func.func @transform_4(%arg0: i32) -> (i32, i32) {
    %c0_i32 = arith.constant 0 : i32
    %c0_i32_0 = arith.constant 0 : i32
    %c0_i32_1 = arith.constant 0 : i32
    return %c0_i32, %c0_i32_0 : i32, i32
  }
  func.func @transform_5(%arg0: i32) -> (i32, i32, i32, i32) {
    %c0_i32 = arith.constant 0 : i32
    %c0_i32_0 = arith.constant 0 : i32
    %c0_i32_1 = arith.constant 0 : i32
    %c0_i32_2 = arith.constant 0 : i32
    return %arg0, %c0_i32, %c0_i32_0, %c0_i32_1 : i32, i32, i32, i32
  }
  func.func @transform_6(%arg0: i32) -> (i32, i32, i32) {
    %c0_i32 = arith.constant 0 : i32
    %c0_i32_0 = arith.constant 0 : i32
    %c0_i32_1 = arith.constant 0 : i32
    return %arg0, %c0_i32, %c0_i32_0 : i32, i32, i32
  }
}

</mosaic_0001>

<llo_original>
// kernel: tpu_custom_call.1
$region0: #{tpu_custom_call.1}
  #allocation0 [shape = 'u32[]', space=smem, size = 0x4, offset = 0x4, fixed_abs, tag = 'smem constant byte address 0x4 - core index']
  #allocation1 [shape = 'u32[144,128]{1,0:T(1,128)}', space=vmem, size = 0x12000, scoped, tag = 'internal scratch']
  %s0 = inlined_call_operand.hbm [shape: f32[2,16,64], index: 0, kind: input, shape index: {}]
  %s1 = inlined_call_operand.hbm [shape: f32[2,64,128], index: 1, kind: input, shape index: {}]
  %s2 = inlined_call_operand.vmem [shape: f32[1,128], index: 2, kind: input, shape index: {}]
  %s3 = inlined_call_operand.hbm [shape: f32[3,128,128], index: 3, kind: input, shape index: {}]
  %s4 = inlined_call_operand.vmem [shape: f32[1,128], index: 4, kind: input, shape index: {}]
  %s5 = inlined_call_operand.hbm [shape: f32[2,2,16,128], index: 5, kind: output, shape index: {0}]
  %s6 = inlined_call_operand.hbm [shape: f32[2,2,128], index: 6, kind: output, shape index: {1}]
  %7 = xla_tuple %s5, %s6
  %s8 = sld [smem:[#allocation0]]
  $region73: #{tpu_custom_call.1} parent=0
    _
  %s10 = ssub.s32 1, %s8
  %s11 = scalar_select 0, %s10, %s8
  $region1: #{tpu_custom_call.1} parent=0
    #allocation2 [shape = 'u8[16384]{0}', space=vmem, size = 0x4000, scoped, tag = 'input window, operand 0']
    #allocation3 [shape = 's32[2]{0}', space=sflag, size = 0x8, scoped, tag = 'scoped memory for tpu_custom_call.1']
    #allocation4 [shape = 's32[2]{0}', space=sflag, size = 0x8, scoped, tag = 'scoped memory for tpu_custom_call.1']
    #allocation5 [shape = 'u8[65536]{0}', space=vmem, size = 0x10000, scoped, tag = 'input window, operand 1, single buffered']
    #allocation6 [shape = 's32[1]{0}', space=sflag, size = 0x4, scoped, tag = 'scoped memory for tpu_custom_call.1']
    #allocation7 [shape = 'u8[196608]{0}', space=vmem, size = 0x30000, scoped, tag = 'input window, operand 3, single buffered']
    #allocation8 [shape = 'u8[32768]{0}', space=vmem, size = 0x8000, scoped, tag = 'output window, operand 0']
    #allocation9 [shape = 'u8[2048]{0}', space=vmem, size = 0x800, scoped, tag = 'output window, operand 1']
    #allocation10 [shape = 's32[2]{0}', space=sflag, size = 0x8, scoped, tag = 'scoped memory for tpu_custom_call.1']
    %12 = vsyncpa [#allocation3], 0
    %s13 = scalar_lea.sflag [#allocation3], 1
    %14 = vsyncpa %s13, 0
    %15 = vsyncpa [#allocation6], 0
    %16 = vsyncpa [#allocation4], 0
    %s17 = scalar_lea.sflag [#allocation4], 1
    %18 = vsyncpa %s17, 0
    %19 = vsyncpa [#allocation10], 0
    %s20 = scalar_lea.sflag [#allocation10], 1
    %21 = vsyncpa %s20, 0
    loop: start=0, step=1, limit=4
    $region2: #{tpu_custom_call.1} parent=1 // loop_pre_header
      _
    $region3: #{tpu_custom_call.1} parent=1 // loop_header
      %s23 = sphi 0, %s27
      %p24 = scmp.ge.s32.totalorder %s23, 4
      %s33 = sphi 0, %s35
      %s36 = sphi 0, %s33
      %s37 = sphi 0, %s36
      %s53 = sphi 0, %s37
      %s57 = sphi 0, %s57
      %s59 = sphi 0, %s57
      %s60 = sphi 0, %s59
      %s74 = sphi 0, %s60
      %s78 = sphi 0, %s78
      %s80 = sphi 0, %s78
      %s81 = sphi 0, %s80
      %s95 = sphi 0, %s81
      %s99 = sphi 0, %s99
      %s101 = sphi 0, %s99
      %s102 = sphi 0, %s101
      %s116 = sphi 0, %s102
      %s120 = sphi 0, %s120
      %s122 = sphi 0, %s120
      %s123 = sphi 0, %s122
      %s137 = sphi 0, %s123
      %s143 = sphi 0, %s145
      %s146 = sphi 0, %s143
      %s147 = sphi 0, %s146
      %s163 = sphi 0, %s147
      %s169 = sphi 0, %s171
      %s172 = sphi 0, %s169
      %s173 = sphi 0, %s172
      %s189 = sphi 0, %s173
    $region4: #{tpu_custom_call.1} parent=1 // loop_header_branch
      %26 = sbr.rel (%p24) target = $region8
    $region5: #{tpu_custom_call.1} parent=1 // loop_body
      %s28 = ssub.s32 %s23, 1
      %s29 = ssub.s32 %s23, 2
      %s30 = sadd.s32 %s23, 1
      %s31 = ssub.s32 %s23, %s30
      %p32 = scmp.eq.s32.totalorder %s31, 0
      %s34 = sadd.s32 %s33, 1
      %s35 = scalar_select %p32, %s33, %s34
      %p38 = pneg %p32
      %p39 = scmp.eq.s32.totalorder %s23, 1
      %p40 = por %p38, %p39
      %p41 = scmp.ne.s32.totalorder %s33, %s36
      %p42 = scmp.eq.s32.totalorder %s23, 0
      %p43 = por %p41, %p42
      %p44 = scmp.ne.s32.totalorder %s33, %s36
      %p45 = scmp.eq.s32.totalorder %s28, 1
      %p46 = por %p44, %p45
      %p47 = scmp.ne.s32.totalorder %s36, %s37
      %p48 = scmp.eq.s32.totalorder %s28, 0
      %p49 = por %p47, %p48
      %p50 = scmp.ne.s32.totalorder %s36, %s37
      %p51 = scmp.eq.s32.totalorder %s29, 1
      %p52 = por %p50, %p51
      %p54 = scmp.ne.s32.totalorder %s37, %s53
      %p55 = scmp.eq.s32.totalorder %s29, 0
      %p56 = por %p54, %p55
      %s58 = sadd.s32 %s57, 1
      %p61 = scmp.eq.s32.totalorder %s23, 1
      %p62 = scmp.ne.s32.totalorder %s57, %s59
      %p63 = scmp.eq.s32.totalorder %s23, 0
      %p64 = por %p62, %p63
      %p65 = scmp.ne.s32.totalorder %s57, %s59
      %p66 = scmp.eq.s32.totalorder %s28, 1
      %p67 = por %p65, %p66
      %p68 = scmp.ne.s32.totalorder %s59, %s60
      %p69 = scmp.eq.s32.totalorder %s28, 0
      %p70 = por %p68, %p69
      %p71 = scmp.ne.s32.totalorder %s59, %s60
      %p72 = scmp.eq.s32.totalorder %s29, 1
      %p73 = por %p71, %p72
      %p75 = scmp.ne.s32.totalorder %s60, %s74
      %p76 = scmp.eq.s32.totalorder %s29, 0
      %p77 = por %p75, %p76
      %s79 = sadd.s32 %s78, 1
      %p82 = scmp.eq.s32.totalorder %s23, 1
      %p83 = scmp.ne.s32.totalorder %s78, %s80
      %p84 = scmp.eq.s32.totalorder %s23, 0
      %p85 = por %p83, %p84
      %p86 = scmp.ne.s32.totalorder %s78, %s80
      %p87 = scmp.eq.s32.totalorder %s28, 1
      %p88 = por %p86, %p87
      %p89 = scmp.ne.s32.totalorder %s80, %s81
      %p90 = scmp.eq.s32.totalorder %s28, 0
      %p91 = por %p89, %p90
      %p92 = scmp.ne.s32.totalorder %s80, %s81
      %p93 = scmp.eq.s32.totalorder %s29, 1
      %p94 = por %p92, %p93
      %p96 = scmp.ne.s32.totalorder %s81, %s95
      %p97 = scmp.eq.s32.totalorder %s29, 0
      %p98 = por %p96, %p97
      %s100 = sadd.s32 %s99, 1
      %p103 = scmp.eq.s32.totalorder %s23, 1
      %p104 = scmp.ne.s32.totalorder %s99, %s101
      %p105 = scmp.eq.s32.totalorder %s23, 0
      %p106 = por %p104, %p105
      %p107 = scmp.ne.s32.totalorder %s99, %s101
      %p108 = scmp.eq.s32.totalorder %s28, 1
      %p109 = por %p107, %p108
      %p110 = scmp.ne.s32.totalorder %s101, %s102
      %p111 = scmp.eq.s32.totalorder %s28, 0
      %p112 = por %p110, %p111
      %p113 = scmp.ne.s32.totalorder %s101, %s102
      %p114 = scmp.eq.s32.totalorder %s29, 1
      %p115 = por %p113, %p114
      %p117 = scmp.ne.s32.totalorder %s102, %s116
      %p118 = scmp.eq.s32.totalorder %s29, 0
      %p119 = por %p117, %p118
      %s121 = sadd.s32 %s120, 1
      %p124 = scmp.eq.s32.totalorder %s23, 1
      %p125 = scmp.ne.s32.totalorder %s120, %s122
      %p126 = scmp.eq.s32.totalorder %s23, 0
      %p127 = por %p125, %p126
      %p128 = scmp.ne.s32.totalorder %s120, %s122
      %p129 = scmp.eq.s32.totalorder %s28, 1
      %p130 = por %p128, %p129
      %p131 = scmp.ne.s32.totalorder %s122, %s123
      %p132 = scmp.eq.s32.totalorder %s28, 0
      %p133 = por %p131, %p132
      %p134 = scmp.ne.s32.totalorder %s122, %s123
      %p135 = scmp.eq.s32.totalorder %s29, 1
      %p136 = por %p134, %p135
      %p138 = scmp.ne.s32.totalorder %s123, %s137
      %p139 = scmp.eq.s32.totalorder %s29, 0
      %p140 = por %p138, %p139
      %s141 = ssub.s32 %s23, %s30
      %p142 = scmp.eq.s32.totalorder %s141, 0
      %s144 = sadd.s32 %s143, 1
      %s145 = scalar_select %p142, %s143, %s144
      %p148 = pneg %p142
      %p149 = scmp.eq.s32.totalorder %s23, 1
      %p150 = por %p148, %p149
      %p151 = scmp.ne.s32.totalorder %s143, %s146
      %p152 = scmp.eq.s32.totalorder %s23, 0
      %p153 = por %p151, %p152
      %p154 = scmp.ne.s32.totalorder %s143, %s146
      %p155 = scmp.eq.s32.totalorder %s28, 1
      %p156 = por %p154, %p155
      %p157 = scmp.ne.s32.totalorder %s146, %s147
      %p158 = scmp.eq.s32.totalorder %s28, 0
      %p159 = por %p157, %p158
      %p160 = scmp.ne.s32.totalorder %s146, %s147
      %p161 = scmp.eq.s32.totalorder %s29, 1
      %p162 = por %p160, %p161
      %p164 = scmp.ne.s32.totalorder %s147, %s163
      %p165 = scmp.eq.s32.totalorder %s29, 0
      %p166 = por %p164, %p165
      %s167 = ssub.s32 %s23, %s30
      %p168 = scmp.eq.s32.totalorder %s167, 0
      %s170 = sadd.s32 %s169, 1
      %s171 = scalar_select %p168, %s169, %s170
      %p174 = pneg %p168
      %p175 = scmp.eq.s32.totalorder %s23, 1
      %p176 = por %p174, %p175
      %p177 = scmp.ne.s32.totalorder %s169, %s172
      %p178 = scmp.eq.s32.totalorder %s23, 0
      %p179 = por %p177, %p178
      %p180 = scmp.ne.s32.totalorder %s169, %s172
      %p181 = scmp.eq.s32.totalorder %s28, 1
      %p182 = por %p180, %p181
      %p183 = scmp.ne.s32.totalorder %s172, %s173
      %p184 = scmp.eq.s32.totalorder %s28, 0
      %p185 = por %p183, %p184
      %p186 = scmp.ne.s32.totalorder %s172, %s173
      %p187 = scmp.eq.s32.totalorder %s29, 1
      %p188 = por %p186, %p187
      %p190 = scmp.ne.s32.totalorder %s173, %s189
      %p191 = scmp.eq.s32.totalorder %s29, 0
      %p192 = por %p190, %p191
      %p193 = scmp.le.s32.totalorder 1, %s23
      %p194 = scmp.lt.s32.totalorder %s23, 3
      %p195 = pnand %p193, %p194
      %p196 = pneg %p195
      // Predicated region
      $region9: #{tpu_custom_call.1} parent=5 // pred_check
        _
      $region10: #{tpu_custom_call.1} parent=5 // pred_check_branch
        %198 = sbr.rel (%p195) target = $region12
      $region11: #{tpu_custom_call.1} parent=5 // pred_region
        %s199 = ssub.s32 %s23, 1
        // Predicated region
        $region13: #{tpu_custom_call.1} parent=11 // pred_check
          %p200 = pneg %p70
        $region14: #{tpu_custom_call.1} parent=11 // pred_check_branch
          %202 = sbr.rel (%p200) target = $region16
        $region15: #{tpu_custom_call.1} parent=11 // pred_region
          %s204 = ssub.s32 2048, 2048
          %205 = vsyncadd [#allocation6], %s204
          %s206 = sshll.u32 [#allocation5], 4
          %s207 = int_to_ptr.vmem [resolvable:$true] %s206
          %212 = dma.hbm_to_vmem [thread:$0]  %s1, 2048, %s207, [#allocation6], 128, 128, 8
        $region16: #{tpu_custom_call.1} parent=11 // pred_fallthru
          _
        // Predicated region
        $region17: #{tpu_custom_call.1} parent=11 // pred_check
          %p213 = pneg %p91
        $region18: #{tpu_custom_call.1} parent=11 // pred_check_branch
          %215 = sbr.rel (%p213) target = $region20
        $region19: #{tpu_custom_call.1} parent=11 // pred_region
          _
        $region20: #{tpu_custom_call.1} parent=11 // pred_fallthru
          _
        // Predicated region
        $region21: #{tpu_custom_call.1} parent=11 // pred_check
          %p216 = pneg %p112
        $region22: #{tpu_custom_call.1} parent=11 // pred_check_branch
          %218 = sbr.rel (%p216) target = $region24
        $region23: #{tpu_custom_call.1} parent=11 // pred_region
          %s220 = ssub.s32 6144, 6144
          %221 = vsyncadd [#allocation6], %s220
          %s222 = sshll.u32 [#allocation7], 4
          %s223 = int_to_ptr.vmem [resolvable:$true] %s222
          %228 = dma.hbm_to_vmem [thread:$0]  %s3, 6144, %s223, [#allocation6], 128, 128, 8
        $region24: #{tpu_custom_call.1} parent=11 // pred_fallthru
          _
        // Predicated region
        $region25: #{tpu_custom_call.1} parent=11 // pred_check
          %p229 = pneg %p133
        $region26: #{tpu_custom_call.1} parent=11 // pred_check_branch
          %231 = sbr.rel (%p229) target = $region28
        $region27: #{tpu_custom_call.1} parent=11 // pred_region
          _
        $region28: #{tpu_custom_call.1} parent=11 // pred_fallthru
          _
      $region12: #{tpu_custom_call.1} parent=5 // pred_fallthru
        _
      %p232 = scmp.lt.s32.totalorder %s23, 2
      // Predicated region
      $region29: #{tpu_custom_call.1} parent=5 // pred_check
        %p233 = pneg %p232
      $region30: #{tpu_custom_call.1} parent=5 // pred_check_branch
        %235 = sbr.rel (%p233) target = $region32
      $region31: #{tpu_custom_call.1} parent=5 // pred_region
        // Predicated region
        $region33: #{tpu_custom_call.1} parent=31 // pred_check
          %p236 = pneg %p43
        $region34: #{tpu_custom_call.1} parent=31 // pred_check_branch
          %238 = sbr.rel (%p236) target = $region36
        $region35: #{tpu_custom_call.1} parent=31 // pred_region
          %s239 = sand.u32 %s33, 1
          %s240 = scalar_lea.sflag [#allocation3], %s239
          %s241 = sand.u32 %s33, 1
          %s242 = smul.addr %s241, 16
          %s243 = scalar_lea.vmem [#allocation2], %s242
          %s245 = ssub.s32 256, 256
          %246 = vsyncadd %s240, %s245
          %s247 = smul.addr %s23, 2
          %s248 = smul.addr %s247, 128
          %s249 = scalar_lea.hbm %s0, %s248
          %s250 = sshll.u32 %s243, 4
          %s251 = int_to_ptr.vmem [resolvable:$true] %s250
          %256 = dma.hbm_to_vmem [thread:$0]  %s249, 256, %s251, %s240, 128, 128, 8
        $region36: #{tpu_custom_call.1} parent=31 // pred_fallthru
          _
      $region32: #{tpu_custom_call.1} parent=5 // pred_fallthru
        _
      %p257 = scmp.le.s32.totalorder 1, %s23
      %p258 = scmp.lt.s32.totalorder %s23, 3
      %p259 = pnand %p257, %p258
      %p260 = pneg %p259
      // Predicated region
      $region37: #{tpu_custom_call.1} parent=5 // pred_check
        _
      $region38: #{tpu_custom_call.1} parent=5 // pred_check_branch
        %262 = sbr.rel (%p259) target = $region40
      $region39: #{tpu_custom_call.1} parent=5 // pred_region
        %s263 = ssub.s32 %s23, 1
        %s264 = sand.u32 %s36, 1
        %s265 = scalar_lea.sflag [#allocation3], %s264
        %s266 = sand.u32 %s36, 1
        %s267 = smul.addr %s266, 16
        %s268 = scalar_lea.vmem [#allocation2], %s267
        // Predicated region
        $region41: #{tpu_custom_call.1} parent=39 // pred_check
          %p269 = pneg %p49
        $region42: #{tpu_custom_call.1} parent=39 // pred_check_branch
          %271 = sbr.rel (%p269) target = $region44
        $region43: #{tpu_custom_call.1} parent=39 // pred_region
          %272 = dma.done %s265, 256
        $region44: #{tpu_custom_call.1} parent=39 // pred_fallthru
          _
        // Predicated region
        $region45: #{tpu_custom_call.1} parent=39 // pred_check
          %p273 = pneg %p70
        $region46: #{tpu_custom_call.1} parent=39 // pred_check_branch
          %275 = sbr.rel (%p273) target = $region48
        $region47: #{tpu_custom_call.1} parent=39 // pred_region
          %276 = dma.done [#allocation6], 2048
        $region48: #{tpu_custom_call.1} parent=39 // pred_fallthru
          _
        // Predicated region
        $region49: #{tpu_custom_call.1} parent=39 // pred_check
          %p277 = pneg %p112
        $region50: #{tpu_custom_call.1} parent=39 // pred_check_branch
          %279 = sbr.rel (%p277) target = $region52
        $region51: #{tpu_custom_call.1} parent=39 // pred_region
          %280 = dma.done [#allocation6], 6144
        $region52: #{tpu_custom_call.1} parent=39 // pred_fallthru
          _
        %s281 = sand.u32 %s36, 1
        %s282 = scalar_lea.sflag [#allocation3], %s281
        %s283 = sand.u32 %s36, 1
        %s284 = smul.addr %s283, 16
        %s285 = scalar_lea.vmem [#allocation2], %s284
        %p286 = pneg %p49
        %p287 = pneg %p46
        %p288 = pneg %p70
        %p289 = pneg %p67
        %p290 = pneg %p91
        %p291 = pneg %p88
        %p292 = pneg %p112
        %p293 = pneg %p109
        %p294 = pneg %p133
        %p295 = pneg %p130
        %p296 = pneg %p159
        %p297 = pneg %p156
        %s298 = sand.u32 %s146, 1
        %s299 = scalar_lea.sflag [#allocation4], %s298
        %s300 = sand.u32 %s146, 1
        %s301 = smul.addr %s300, 32
        %s302 = scalar_lea.vmem [#allocation8], %s301
        %p303 = pneg %p185
        %p304 = pneg %p182
        %s305 = sand.u32 %s172, 1
        %s306 = scalar_lea.sflag [#allocation10], %s305
        %s307 = sand.u32 %s172, 1
        %s308 = smul.addr %s307, 2
        %s309 = scalar_lea.vmem [#allocation9], %s308
        %v310 = vld [vmem:[%s268] sm:$0xff]
        %v311 = vld [vmem:[%s268 + $0x8] sm:$0xff]
        %v312 = vld [vmem:[%s2] sm:$0x1]
        %v313 = vld [vmem:[#allocation5] sm:$0xff]
        %v314 = vld [vmem:[#allocation5 + $0x8] sm:$0xff]
        %v315 = vld [vmem:[#allocation5 + $0x10] sm:$0xff]
        %v316 = vld [vmem:[#allocation5 + $0x18] sm:$0xff]
        %v317 = vld [vmem:[#allocation5 + $0x20] sm:$0xff]
        %v318 = vld [vmem:[#allocation5 + $0x28] sm:$0xff]
        %v319 = vld [vmem:[#allocation5 + $0x30] sm:$0xff]
        %v320 = vld [vmem:[#allocation5 + $0x38] sm:$0xff]
        %v322 = vlaneseq
        %v323 = vshrl.u32 %v322, 7
        %v324 = vsub.s32 0, %v323
        %v325 = vrot.slane %v312, %v324
        %vm327 = vcmask 523264
        %v329 = vsel %vm327, %v310, 0
        %v332 = vsel %vm327, %v311, 0
        %334 = vmatprep.subr.mxu0 0.0
        %335 = vmatpush1.msra.mxu0 %v313
        %336 = vmatprep.subr.mxu0 0.0
        %337 = vmatpush1.msra.mxu0 %v314
        %338 = vmatprep.subr.mxu0 0.0
        %339 = vmatpush1.msra.mxu0 %v315
        %340 = vmatprep.subr.mxu0 0.0
        %341 = vmatpush1.msra.mxu0 %v316
        %342 = vmatprep.subr.mxu0 0.0
        %343 = vmatpush1.msra.mxu0 %v317
        %344 = vmatprep.subr.mxu0 0.0
        %345 = vmatpush1.msra.mxu0 %v318
        %346 = vmatprep.subr.mxu0 0.0
        %347 = vmatpush1.msra.mxu0 %v319
        %348 = vmatprep.subr.mxu0 0.0
        %349 = vmatpush1.msra.mxu0 %v320
        %350 = vmatprep.subr.mxu0 0.0
        %351 = vmatpush1.msra.mxu0 0.0
        %352 = vmatprep.subr.mxu0 0.0
        %353 = vmatpush1.msra.mxu0 0.0
        %354 = vmatprep.subr.mxu0 0.0
        %355 = vmatpush1.msra.mxu0 0.0
        %356 = vmatprep.subr.mxu0 0.0
        %357 = vmatpush1.msra.mxu0 0.0
        %358 = vmatprep.subr.mxu0 0.0
        %359 = vmatpush1.msra.mxu0 0.0
        %360 = vmatprep.subr.mxu0 0.0
        %361 = vmatpush1.msra.mxu0 0.0
        %362 = vmatprep.subr.mxu0 0.0
        %363 = vmatpush1.msra.mxu0 0.0
        %364 = vmatprep.subr.mxu0 0.0
        %365 = vmatpush1.msra.mxu0 0.0
        %366 = vmatprep.subr.mxu0 0.0
        %367 = vmatpush1.msra.mxu0 0.0
        %368 = vmatprep.subr.mxu0 0.0
        %369 = vmatpush1.msra.mxu0 0.0
        %370 = vmatprep.subr.mxu0 0.0
        %371 = vmatpush1.msra.mxu0 0.0
        %372 = vmatprep.subr.mxu0 0.0
        %373 = vmatpush1.msra.mxu0 0.0
        %374 = vmatprep.subr.mxu0 0.0
        %375 = vmatpush1.msra.mxu0 0.0
        %376 = vmatprep.subr.mxu0 0.0
        %377 = vmatpush1.msra.mxu0 0.0
        %378 = vmatprep.subr.mxu0 0.0
        %379 = vmatpush1.msra.mxu0 0.0
        %380 = vmatprep.subr.mxu0 0.0
        %381 = vmatpush1.msra.mxu0 0.0
        %382 = vmatprep.subr.mxu0 0.0
        %383 = vmatpush1.msra.mxu0 0.0
        %384 = vmatprep.subr.mxu0 0.0
        %385 = vmatpush1.msra.mxu0 0.0
        %386 = vmatprep.subr.mxu0 0.0
        %387 = vmatpush1.msra.mxu0 0.0
        %388 = vmatprep.subr.mxu0 0.0
        %389 = vmatpush1.msra.mxu0 0.0
        %390 = vmatprep.subr.mxu0 0.0
        %391 = vmatpush1.msra.mxu0 0.0
        %392 = vmatprep.subr.mxu0 0.0
        %393 = vmatpush1.msra.mxu0 0.0
        %394 = vmatprep.subr.mxu0 0.0
        %395 = vmatpush1.msra.mxu0 0.0
        %396 = vmatprep.subr.mxu0 0.0
        %397 = vmatpush1.msra.mxu0 0.0
        %398 = vmatprep.mubr.f32.mxu0 0.0
        %399 = vmatmul.mubr.f32.gmra.mrb[0].mxu0 %v329
        %v400 = vpop.f32.mrb[0].mxu0
        %v401 = vadd.f32 %v325, %v400
        %v402 = vpop.f32.mrb[0].mxu0
        %403 = vmatprep.mubr.f32.mxu0 0.0
        %404 = vmatmul.mubr.f32.gmra.mrb[0].mxu0 %v332
        %v405 = vpop.f32.mrb[0].mxu0
        %v406 = vadd.f32 %v325, %v405
        %v407 = vpop.f32.mrb[0].mxu0
        %408 = vdwg.mxu0
        %s409 = scalar_lea.vmem [#allocation5], 64
        %v410 = vld [vmem:[%s409] sm:$0xff]
        %v411 = vld [vmem:[%s409 + $0x8] sm:$0xff]
        %v412 = vld [vmem:[%s409 + $0x10] sm:$0xff]
        %v413 = vld [vmem:[%s409 + $0x18] sm:$0xff]
        %v414 = vld [vmem:[%s409 + $0x20] sm:$0xff]
        %v415 = vld [vmem:[%s409 + $0x28] sm:$0xff]
        %v416 = vld [vmem:[%s409 + $0x30] sm:$0xff]
        %v417 = vld [vmem:[%s409 + $0x38] sm:$0xff]
        %418 = vmatprep.subr.mxu0 0.0
        %419 = vmatpush1.msra.mxu0 %v410
        %420 = vmatprep.subr.mxu0 0.0
        %421 = vmatpush1.msra.mxu0 %v411
        %422 = vmatprep.subr.mxu0 0.0
        %423 = vmatpush1.msra.mxu0 %v412
        %424 = vmatprep.subr.mxu0 0.0
        %425 = vmatpush1.msra.mxu0 %v413
        %426 = vmatprep.subr.mxu0 0.0
        %427 = vmatpush1.msra.mxu0 %v414
        %428 = vmatprep.subr.mxu0 0.0
        %429 = vmatpush1.msra.mxu0 %v415
        %430 = vmatprep.subr.mxu0 0.0
        %431 = vmatpush1.msra.mxu0 %v416
        %432 = vmatprep.subr.mxu0 0.0
        %433 = vmatpush1.msra.mxu0 %v417
        %434 = vmatprep.subr.mxu0 0.0
        %435 = vmatpush1.msra.mxu0 0.0
        %436 = vmatprep.subr.mxu0 0.0
        %437 = vmatpush1.msra.mxu0 0.0
        %438 = vmatprep.subr.mxu0 0.0
        %439 = vmatpush1.msra.mxu0 0.0
        %440 = vmatprep.subr.mxu0 0.0
        %441 = vmatpush1.msra.mxu0 0.0
        %442 = vmatprep.subr.mxu0 0.0
        %443 = vmatpush1.msra.mxu0 0.0
        %444 = vmatprep.subr.mxu0 0.0
        %445 = vmatpush1.msra.mxu0 0.0
        %446 = vmatprep.subr.mxu0 0.0
        %447 = vmatpush1.msra.mxu0 0.0
        %448 = vmatprep.subr.mxu0 0.0
        %449 = vmatpush1.msra.mxu0 0.0
        %450 = vmatprep.subr.mxu0 0.0
        %451 = vmatpush1.msra.mxu0 0.0
        %452 = vmatprep.subr.mxu0 0.0
        %453 = vmatpush1.msra.mxu0 0.0
        %454 = vmatprep.subr.mxu0 0.0
        %455 = vmatpush1.msra.mxu0 0.0
        %456 = vmatprep.subr.mxu0 0.0
        %457 = vmatpush1.msra.mxu0 0.0
        %458 = vmatprep.subr.mxu0 0.0
        %459 = vmatpush1.msra.mxu0 0.0
        %460 = vmatprep.subr.mxu0 0.0
        %461 = vmatpush1.msra.mxu0 0.0
        %462 = vmatprep.subr.mxu0 0.0
        %463 = vmatpush1.msra.mxu0 0.0
        %464 = vmatprep.subr.mxu0 0.0
        %465 = vmatpush1.msra.mxu0 0.0
        %466 = vmatprep.subr.mxu0 0.0
        %467 = vmatpush1.msra.mxu0 0.0
        %468 = vmatprep.subr.mxu0 0.0
        %469 = vmatpush1.msra.mxu0 0.0
        %470 = vmatprep.subr.mxu0 0.0
        %471 = vmatpush1.msra.mxu0 0.0
        %472 = vmatprep.subr.mxu0 0.0
        %473 = vmatpush1.msra.mxu0 0.0
        %474 = vmatprep.subr.mxu0 0.0
        %475 = vmatpush1.msra.mxu0 0.0
        %476 = vmatprep.subr.mxu0 0.0
        %477 = vmatpush1.msra.mxu0 0.0
        %478 = vmatprep.subr.mxu0 0.0
        %479 = vmatpush1.msra.mxu0 0.0
        %480 = vmatprep.subr.mxu0 0.0
        %481 = vmatpush1.msra.mxu0 0.0
        %482 = vmatprep.mubr.f32.mxu0 0.0
        %483 = vmatmul.mubr.f32.gmra.mrb[0].mxu0 %v329
        %v484 = vpop.f32.mrb[0].mxu0
        %v485 = vadd.f32 %v325, %v484
        %v486 = vpop.f32.mrb[0].mxu0
        %487 = vmatprep.mubr.f32.mxu0 0.0
        %488 = vmatmul.mubr.f32.gmra.mrb[0].mxu0 %v332
        %v489 = vpop.f32.mrb[0].mxu0
        %v490 = vadd.f32 %v325, %v489
        %v491 = vpop.f32.mrb[0].mxu0
        %492 = vdwg.mxu0
        %vm495 = vcmask 1040384
        %v496 = vrot.slane %v485, 7
        %v497 = vrot.slane %v490, 7
        %v498 = vsel %vm495, %v496, %v497
        %v501 = vsel %vm495, 0.0, %v496
        %vm504 = vcmask 1046528
        %v505 = vrot.slane %v401, 1
        %v506 = vrot.slane %v406, 1
        %v507 = vsel %vm504, %v505, %v506
        %v510 = vsel %vm504, %v506, 0.0
        %v511 = vld [vmem:[#allocation7] sm:$0xff]
        %v512 = vld [vmem:[#allocation7 + $0x8] sm:$0xff]
        %v513 = vld [vmem:[#allocation7 + $0x10] sm:$0xff]
        %v514 = vld [vmem:[#allocation7 + $0x18] sm:$0xff]
        %v515 = vld [vmem:[#allocation7 + $0x20] sm:$0xff]
        %v516 = vld [vmem:[#allocation7 + $0x28] sm:$0xff]
        %v517 = vld [vmem:[#allocation7 + $0x30] sm:$0xff]
        %v518 = vld [vmem:[#allocation7 + $0x38] sm:$0xff]
        %v519 = vld [vmem:[#allocation7 + $0x40] sm:$0xff]
        %v520 = vld [vmem:[#allocation7 + $0x48] sm:$0xff]
        %v521 = vld [vmem:[#allocation7 + $0x50] sm:$0xff]
        %v522 = vld [vmem:[#allocation7 + $0x58] sm:$0xff]
        %v523 = vld [vmem:[#allocation7 + $0x60] sm:$0xff]
        %v524 = vld [vmem:[#allocation7 + $0x68] sm:$0xff]
        %v525 = vld [vmem:[#allocation7 + $0x70] sm:$0xff]
        %v526 = vld [vmem:[#allocation7 + $0x78] sm:$0xff]
        %s527 = scalar_lea.vmem [#allocation7], 128
        %v528 = vld [vmem:[%s527] sm:$0xff]
        %v529 = vld [vmem:[%s527 + $0x8] sm:$0xff]
        %v530 = vld [vmem:[%s527 + $0x10] sm:$0xff]
        %v531 = vld [vmem:[%s527 + $0x18] sm:$0xff]
        %v532 = vld [vmem:[%s527 + $0x20] sm:$0xff]
        %v533 = vld [vmem:[%s527 + $0x28] sm:$0xff]
        %v534 = vld [vmem:[%s527 + $0x30] sm:$0xff]
        %v535 = vld [vmem:[%s527 + $0x38] sm:$0xff]
        %v536 = vld [vmem:[%s527 + $0x40] sm:$0xff]
        %v537 = vld [vmem:[%s527 + $0x48] sm:$0xff]
        %v538 = vld [vmem:[%s527 + $0x50] sm:$0xff]
        %v539 = vld [vmem:[%s527 + $0x58] sm:$0xff]
        %v540 = vld [vmem:[%s527 + $0x60] sm:$0xff]
        %v541 = vld [vmem:[%s527 + $0x68] sm:$0xff]
        %v542 = vld [vmem:[%s527 + $0x70] sm:$0xff]
        %v543 = vld [vmem:[%s527 + $0x78] sm:$0xff]
        %s544 = scalar_lea.vmem [#allocation7], 256
        %v545 = vld [vmem:[%s544] sm:$0xff]
        %v546 = vld [vmem:[%s544 + $0x8] sm:$0xff]
        %v547 = vld [vmem:[%s544 + $0x10] sm:$0xff]
        %v548 = vld [vmem:[%s544 + $0x18] sm:$0xff]
        %v549 = vld [vmem:[%s544 + $0x20] sm:$0xff]
        %v550 = vld [vmem:[%s544 + $0x28] sm:$0xff]
        %v551 = vld [vmem:[%s544 + $0x30] sm:$0xff]
        %v552 = vld [vmem:[%s544 + $0x38] sm:$0xff]
        %v553 = vld [vmem:[%s544 + $0x40] sm:$0xff]
        %v554 = vld [vmem:[%s544 + $0x48] sm:$0xff]
        %v555 = vld [vmem:[%s544 + $0x50] sm:$0xff]
        %v556 = vld [vmem:[%s544 + $0x58] sm:$0xff]
        %v557 = vld [vmem:[%s544 + $0x60] sm:$0xff]
        %v558 = vld [vmem:[%s544 + $0x68] sm:$0xff]
        %v559 = vld [vmem:[%s544 + $0x70] sm:$0xff]
        %v560 = vld [vmem:[%s544 + $0x78] sm:$0xff]
        %v561 = vld [vmem:[%s4] sm:$0x1]
        %562 = vmatprep.subr.mxu0 0.0
        %563 = vmatpush1.msra.mxu0 %v528
        %564 = vmatprep.subr.mxu0 0.0
        %565 = vmatpush1.msra.mxu0 %v529
        %566 = vmatprep.subr.mxu0 0.0
        %567 = vmatpush1.msra.mxu0 %v530
        %568 = vmatprep.subr.mxu0 0.0
        %569 = vmatpush1.msra.mxu0 %v531
        %570 = vmatprep.subr.mxu0 0.0
        %571 = vmatpush1.msra.mxu0 %v532
        %572 = vmatprep.subr.mxu0 0.0
        %573 = vmatpush1.msra.mxu0 %v533
        %574 = vmatprep.subr.mxu0 0.0
        %575 = vmatpush1.msra.mxu0 %v534
        %576 = vmatprep.subr.mxu0 0.0
        %577 = vmatpush1.msra.mxu0 %v535
        %578 = vmatprep.subr.mxu0 0.0
        %579 = vmatpush1.msra.mxu0 %v536
        %580 = vmatprep.subr.mxu0 0.0
        %581 = vmatpush1.msra.mxu0 %v537
        %582 = vmatprep.subr.mxu0 0.0
        %583 = vmatpush1.msra.mxu0 %v538
        %584 = vmatprep.subr.mxu0 0.0
        %585 = vmatpush1.msra.mxu0 %v539
        %586 = vmatprep.subr.mxu0 0.0
        %587 = vmatpush1.msra.mxu0 %v540
        %588 = vmatprep.subr.mxu0 0.0
        %589 = vmatpush1.msra.mxu0 %v541
        %590 = vmatprep.subr.mxu0 0.0
        %591 = vmatpush1.msra.mxu0 %v542
        %592 = vmatprep.subr.mxu0 0.0
        %593 = vmatpush1.msra.mxu0 %v543
        %594 = vmatprep.subr.mxu0 0.0
        %595 = vmatpush1.msra.mxu0 0.0
        %596 = vmatprep.subr.mxu0 0.0
        %597 = vmatpush1.msra.mxu0 0.0
        %598 = vmatprep.subr.mxu0 0.0
        %599 = vmatpush1.msra.mxu0 0.0
        %600 = vmatprep.subr.mxu0 0.0
        %601 = vmatpush1.msra.mxu0 0.0
        %602 = vmatprep.subr.mxu0 0.0
        %603 = vmatpush1.msra.mxu0 0.0
        %604 = vmatprep.subr.mxu0 0.0
        %605 = vmatpush1.msra.mxu0 0.0
        %606 = vmatprep.subr.mxu0 0.0
        %607 = vmatpush1.msra.mxu0 0.0
        %608 = vmatprep.subr.mxu0 0.0
        %609 = vmatpush1.msra.mxu0 0.0
        %610 = vmatprep.subr.mxu0 0.0
        %611 = vmatpush1.msra.mxu0 0.0
        %612 = vmatprep.subr.mxu0 0.0
        %613 = vmatpush1.msra.mxu0 0.0
        %614 = vmatprep.subr.mxu0 0.0
        %615 = vmatpush1.msra.mxu0 0.0
        %616 = vmatprep.subr.mxu0 0.0
        %617 = vmatpush1.msra.mxu0 0.0
        %618 = vmatprep.subr.mxu0 0.0
        %619 = vmatpush1.msra.mxu0 0.0
        %620 = vmatprep.subr.mxu0 0.0
        %621 = vmatpush1.msra.mxu0 0.0
        %622 = vmatprep.subr.mxu0 0.0
        %623 = vmatpush1.msra.mxu0 0.0
        %624 = vmatprep.subr.mxu0 0.0
        %625 = vmatpush1.msra.mxu0 0.0
        %626 = vmatprep.mubr.f32.mxu0 0.0
        %627 = vmatmul.mubr.f32.gmra.mrb[0].mxu0 %v401
        %v628 = vpop.f32.mrb[0].mxu0
        %v629 = vadd.f32 0.0, %v628
        %v630 = vpop.f32.mrb[0].mxu0
        %631 = vmatprep.mubr.f32.mxu0 0.0
        %632 = vmatmul.mubr.f32.gmra.mrb[0].mxu0 %v406
        %v633 = vpop.f32.mrb[0].mxu0
        %v634 = vadd.f32 0.0, %v633
        %v635 = vpop.f32.mrb[0].mxu0
        %636 = vdwg.mxu0
        %637 = vmatprep.subr.mxu0 0.0
        %638 = vmatpush1.msra.mxu0 %v511
        %639 = vmatprep.subr.mxu0 0.0
        %640 = vmatpush1.msra.mxu0 %v512
        %641 = vmatprep.subr.mxu0 0.0
        %642 = vmatpush1.msra.mxu0 %v513
        %643 = vmatprep.subr.mxu0 0.0
        %644 = vmatpush1.msra.mxu0 %v514
        %645 = vmatprep.subr.mxu0 0.0
        %646 = vmatpush1.msra.mxu0 %v515
        %647 = vmatprep.subr.mxu0 0.0
        %648 = vmatpush1.msra.mxu0 %v516
        %649 = vmatprep.subr.mxu0 0.0
        %650 = vmatpush1.msra.mxu0 %v517
        %651 = vmatprep.subr.mxu0 0.0
        %652 = vmatpush1.msra.mxu0 %v518
        %653 = vmatprep.subr.mxu0 0.0
        %654 = vmatpush1.msra.mxu0 %v519
        %655 = vmatprep.subr.mxu0 0.0
        %656 = vmatpush1.msra.mxu0 %v520
        %657 = vmatprep.subr.mxu0 0.0
        %658 = vmatpush1.msra.mxu0 %v521
        %659 = vmatprep.subr.mxu0 0.0
        %660 = vmatpush1.msra.mxu0 %v522
        %661 = vmatprep.subr.mxu0 0.0
        %662 = vmatpush1.msra.mxu0 %v523
        %663 = vmatprep.subr.mxu0 0.0
        %664 = vmatpush1.msra.mxu0 %v524
        %665 = vmatprep.subr.mxu0 0.0
        %666 = vmatpush1.msra.mxu0 %v525
        %667 = vmatprep.subr.mxu0 0.0
        %668 = vmatpush1.msra.mxu0 %v526
        %669 = vmatprep.subr.mxu0 0.0
        %670 = vmatpush1.msra.mxu0 0.0
        %671 = vmatprep.subr.mxu0 0.0
        %672 = vmatpush1.msra.mxu0 0.0
        %673 = vmatprep.subr.mxu0 0.0
        %674 = vmatpush1.msra.mxu0 0.0
        %675 = vmatprep.subr.mxu0 0.0
        %676 = vmatpush1.msra.mxu0 0.0
        %677 = vmatprep.subr.mxu0 0.0
        %678 = vmatpush1.msra.mxu0 0.0
        %679 = vmatprep.subr.mxu0 0.0
        %680 = vmatpush1.msra.mxu0 0.0
        %681 = vmatprep.subr.mxu0 0.0
        %682 = vmatpush1.msra.mxu0 0.0
        %683 = vmatprep.subr.mxu0 0.0
        %684 = vmatpush1.msra.mxu0 0.0
        %685 = vmatprep.subr.mxu0 0.0
        %686 = vmatpush1.msra.mxu0 0.0
        %687 = vmatprep.subr.mxu0 0.0
        %688 = vmatpush1.msra.mxu0 0.0
        %689 = vmatprep.subr.mxu0 0.0
        %690 = vmatpush1.msra.mxu0 0.0
        %691 = vmatprep.subr.mxu0 0.0
        %692 = vmatpush1.msra.mxu0 0.0
        %693 = vmatprep.subr.mxu0 0.0
        %694 = vmatpush1.msra.mxu0 0.0
        %695 = vmatprep.subr.mxu0 0.0
        %696 = vmatpush1.msra.mxu0 0.0
        %697 = vmatprep.subr.mxu0 0.0
        %698 = vmatpush1.msra.mxu0 0.0
        %699 = vmatprep.subr.mxu0 0.0
        %700 = vmatpush1.msra.mxu0 0.0
        %701 = vmatprep.mubr.f32.mxu0 0.0
        %702 = vmatmul.mubr.f32.gmra.mrb[0].mxu0 %v501
        %v703 = vpop.f32.mrb[0].mxu0
        %v704 = vadd.f32 %v629, %v703
        %v705 = vpop.f32.mrb[0].mxu0
        %706 = vmatprep.mubr.f32.mxu0 0.0
        %707 = vmatmul.mubr.f32.gmra.mrb[0].mxu0 %v498
        %v708 = vpop.f32.mrb[0].mxu0
        %v709 = vadd.f32 %v634, %v708
        %v710 = vpop.f32.mrb[0].mxu0
        %711 = vdwg.mxu0
        %712 = vmatprep.subr.mxu0 0.0
        %713 = vmatpush1.msra.mxu0 %v545
        %714 = vmatprep.subr.mxu0 0.0
        %715 = vmatpush1.msra.mxu0 %v546
        %716 = vmatprep.subr.mxu0 0.0
        %717 = vmatpush1.msra.mxu0 %v547
        %718 = vmatprep.subr.mxu0 0.0
        %719 = vmatpush1.msra.mxu0 %v548
        %720 = vmatprep.subr.mxu0 0.0
        %721 = vmatpush1.msra.mxu0 %v549
        %722 = vmatprep.subr.mxu0 0.0
        %723 = vmatpush1.msra.mxu0 %v550
        %724 = vmatprep.subr.mxu0 0.0
        %725 = vmatpush1.msra.mxu0 %v551
        %726 = vmatprep.subr.mxu0 0.0
        %727 = vmatpush1.msra.mxu0 %v552
        %728 = vmatprep.subr.mxu0 0.0
        %729 = vmatpush1.msra.mxu0 %v553
        %730 = vmatprep.subr.mxu0 0.0
        %731 = vmatpush1.msra.mxu0 %v554
        %732 = vmatprep.subr.mxu0 0.0
        %733 = vmatpush1.msra.mxu0 %v555
        %734 = vmatprep.subr.mxu0 0.0
        %735 = vmatpush1.msra.mxu0 %v556
        %736 = vmatprep.subr.mxu0 0.0
        %737 = vmatpush1.msra.mxu0 %v557
        %738 = vmatprep.subr.mxu0 0.0
        %739 = vmatpush1.msra.mxu0 %v558
        %740 = vmatprep.subr.mxu0 0.0
        %741 = vmatpush1.msra.mxu0 %v559
        %742 = vmatprep.subr.mxu0 0.0
        %743 = vmatpush1.msra.mxu0 %v560
        %744 = vmatprep.subr.mxu0 0.0
        %745 = vmatpush1.msra.mxu0 0.0
        %746 = vmatprep.subr.mxu0 0.0
        %747 = vmatpush1.msra.mxu0 0.0
        %748 = vmatprep.subr.mxu0 0.0
        %749 = vmatpush1.msra.mxu0 0.0
        %750 = vmatprep.subr.mxu0 0.0
        %751 = vmatpush1.msra.mxu0 0.0
        %752 = vmatprep.subr.mxu0 0.0
        %753 = vmatpush1.msra.mxu0 0.0
        %754 = vmatprep.subr.mxu0 0.0
        %755 = vmatpush1.msra.mxu0 0.0
        %756 = vmatprep.subr.mxu0 0.0
        %757 = vmatpush1.msra.mxu0 0.0
        %758 = vmatprep.subr.mxu0 0.0
        %759 = vmatpush1.msra.mxu0 0.0
        %760 = vmatprep.subr.mxu0 0.0
        %761 = vmatpush1.msra.mxu0 0.0
        %762 = vmatprep.subr.mxu0 0.0
        %763 = vmatpush1.msra.mxu0 0.0
        %764 = vmatprep.subr.mxu0 0.0
        %765 = vmatpush1.msra.mxu0 0.0
        %766 = vmatprep.subr.mxu0 0.0
        %767 = vmatpush1.msra.mxu0 0.0
        %768 = vmatprep.subr.mxu0 0.0
        %769 = vmatpush1.msra.mxu0 0.0
        %770 = vmatprep.subr.mxu0 0.0
        %771 = vmatpush1.msra.mxu0 0.0
        %772 = vmatprep.subr.mxu0 0.0
        %773 = vmatpush1.msra.mxu0 0.0
        %774 = vmatprep.subr.mxu0 0.0
        %775 = vmatpush1.msra.mxu0 0.0
        %776 = vmatprep.mubr.f32.mxu0 0.0
        %777 = vmatmul.mubr.f32.gmra.mrb[0].mxu0 %v485
        %v778 = vpop.f32.mrb[0].mxu0
        %v779 = vadd.f32 0.0, %v778
        %v780 = vpop.f32.mrb[0].mxu0
        %781 = vmatprep.mubr.f32.mxu0 0.0
        %782 = vmatmul.mubr.f32.gmra.mrb[0].mxu0 %v490
        %v783 = vpop.f32.mrb[0].mxu0
        %v784 = vadd.f32 0.0, %v783
        %v785 = vpop.f32.mrb[0].mxu0
        %786 = vdwg.mxu0
        %v787 = vadd.f32 %v704, %v779
        %v788 = vadd.f32 %v709, %v784
        %v790 = vlaneseq
        %v791 = vshrl.u32 %v790, 7
        %v792 = vsub.s32 0, %v791
        %v793 = vrot.slane %v561, %v792
        %v795 = vadd.f32 %v787, %v793
        %v796 = vadd.f32 %v788, %v793
        %797 = vmatprep.subr.mxu0 0.0
        %798 = vmatpush1.msra.mxu0 %v528
        %799 = vmatprep.subr.mxu0 0.0
        %800 = vmatpush1.msra.mxu0 %v529
        %801 = vmatprep.subr.mxu0 0.0
        %802 = vmatpush1.msra.mxu0 %v530
        %803 = vmatprep.subr.mxu0 0.0
        %804 = vmatpush1.msra.mxu0 %v531
        %805 = vmatprep.subr.mxu0 0.0
        %806 = vmatpush1.msra.mxu0 %v532
        %807 = vmatprep.subr.mxu0 0.0
        %808 = vmatpush1.msra.mxu0 %v533
        %809 = vmatprep.subr.mxu0 0.0
        %810 = vmatpush1.msra.mxu0 %v534
        %811 = vmatprep.subr.mxu0 0.0
        %812 = vmatpush1.msra.mxu0 %v535
        %813 = vmatprep.subr.mxu0 0.0
        %814 = vmatpush1.msra.mxu0 %v536
        %815 = vmatprep.subr.mxu0 0.0
        %816 = vmatpush1.msra.mxu0 %v537
        %817 = vmatprep.subr.mxu0 0.0
        %818 = vmatpush1.msra.mxu0 %v538
        %819 = vmatprep.subr.mxu0 0.0
        %820 = vmatpush1.msra.mxu0 %v539
        %821 = vmatprep.subr.mxu0 0.0
        %822 = vmatpush1.msra.mxu0 %v540
        %823 = vmatprep.subr.mxu0 0.0
        %824 = vmatpush1.msra.mxu0 %v541
        %825 = vmatprep.subr.mxu0 0.0
        %826 = vmatpush1.msra.mxu0 %v542
        %827 = vmatprep.subr.mxu0 0.0
        %828 = vmatpush1.msra.mxu0 %v543
        %829 = vmatprep.subr.mxu0 0.0
        %830 = vmatpush1.msra.mxu0 0.0
        %831 = vmatprep.subr.mxu0 0.0
        %832 = vmatpush1.msra.mxu0 0.0
        %833 = vmatprep.subr.mxu0 0.0
        %834 = vmatpush1.msra.mxu0 0.0
        %835 = vmatprep.subr.mxu0 0.0
        %836 = vmatpush1.msra.mxu0 0.0
        %837 = vmatprep.subr.mxu0 0.0
        %838 = vmatpush1.msra.mxu0 0.0
        %839 = vmatprep.subr.mxu0 0.0
        %840 = vmatpush1.msra.mxu0 0.0
        %841 = vmatprep.subr.mxu0 0.0
        %842 = vmatpush1.msra.mxu0 0.0
        %843 = vmatprep.subr.mxu0 0.0
        %844 = vmatpush1.msra.mxu0 0.0
        %845 = vmatprep.subr.mxu0 0.0
        %846 = vmatpush1.msra.mxu0 0.0
        %847 = vmatprep.subr.mxu0 0.0
        %848 = vmatpush1.msra.mxu0 0.0
        %849 = vmatprep.subr.mxu0 0.0
        %850 = vmatpush1.msra.mxu0 0.0
        %851 = vmatprep.subr.mxu0 0.0
        %852 = vmatpush1.msra.mxu0 0.0
        %853 = vmatprep.subr.mxu0 0.0
        %854 = vmatpush1.msra.mxu0 0.0
        %855 = vmatprep.subr.mxu0 0.0
        %856 = vmatpush1.msra.mxu0 0.0
        %857 = vmatprep.subr.mxu0 0.0
        %858 = vmatpush1.msra.mxu0 0.0
        %859 = vmatprep.subr.mxu0 0.0
        %860 = vmatpush1.msra.mxu0 0.0
        %861 = vmatprep.mubr.f32.mxu0 0.0
        %862 = vmatmul.mubr.f32.gmra.mrb[0].mxu0 %v485
        %v863 = vpop.f32.mrb[0].mxu0
        %v864 = vadd.f32 0.0, %v863
        %v865 = vpop.f32.mrb[0].mxu0
        %866 = vmatprep.mubr.f32.mxu0 0.0
        %867 = vmatmul.mubr.f32.gmra.mrb[0].mxu0 %v490
        %v868 = vpop.f32.mrb[0].mxu0
        %v869 = vadd.f32 0.0, %v868
        %v870 = vpop.f32.mrb[0].mxu0
        %871 = vdwg.mxu0
        %872 = vmatprep.subr.mxu0 0.0
        %873 = vmatpush1.msra.mxu0 %v511
        %874 = vmatprep.subr.mxu0 0.0
        %875 = vmatpush1.msra.mxu0 %v512
        %876 = vmatprep.subr.mxu0 0.0
        %877 = vmatpush1.msra.mxu0 %v513
        %878 = vmatprep.subr.mxu0 0.0
        %879 = vmatpush1.msra.mxu0 %v514
        %880 = vmatprep.subr.mxu0 0.0
        %881 = vmatpush1.msra.mxu0 %v515
        %882 = vmatprep.subr.mxu0 0.0
        %883 = vmatpush1.msra.mxu0 %v516
        %884 = vmatprep.subr.mxu0 0.0
        %885 = vmatpush1.msra.mxu0 %v517
        %886 = vmatprep.subr.mxu0 0.0
        %887 = vmatpush1.msra.mxu0 %v518
        %888 = vmatprep.subr.mxu0 0.0
        %889 = vmatpush1.msra.mxu0 %v519
        %890 = vmatprep.subr.mxu0 0.0
        %891 = vmatpush1.msra.mxu0 %v520
        %892 = vmatprep.subr.mxu0 0.0
        %893 = vmatpush1.msra.mxu0 %v521
        %894 = vmatprep.subr.mxu0 0.0
        %895 = vmatpush1.msra.mxu0 %v522
        %896 = vmatprep.subr.mxu0 0.0
        %897 = vmatpush1.msra.mxu0 %v523
        %898 = vmatprep.subr.mxu0 0.0
        %899 = vmatpush1.msra.mxu0 %v524
        %900 = vmatprep.subr.mxu0 0.0
        %901 = vmatpush1.msra.mxu0 %v525
        %902 = vmatprep.subr.mxu0 0.0
        %903 = vmatpush1.msra.mxu0 %v526
        %904 = vmatprep.subr.mxu0 0.0
        %905 = vmatpush1.msra.mxu0 0.0
        %906 = vmatprep.subr.mxu0 0.0
        %907 = vmatpush1.msra.mxu0 0.0
        %908 = vmatprep.subr.mxu0 0.0
        %909 = vmatpush1.msra.mxu0 0.0
        %910 = vmatprep.subr.mxu0 0.0
        %911 = vmatpush1.msra.mxu0 0.0
        %912 = vmatprep.subr.mxu0 0.0
        %913 = vmatpush1.msra.mxu0 0.0
        %914 = vmatprep.subr.mxu0 0.0
        %915 = vmatpush1.msra.mxu0 0.0
        %916 = vmatprep.subr.mxu0 0.0
        %917 = vmatpush1.msra.mxu0 0.0
        %918 = vmatprep.subr.mxu0 0.0
        %919 = vmatpush1.msra.mxu0 0.0
        %920 = vmatprep.subr.mxu0 0.0
        %921 = vmatpush1.msra.mxu0 0.0
        %922 = vmatprep.subr.mxu0 0.0
        %923 = vmatpush1.msra.mxu0 0.0
        %924 = vmatprep.subr.mxu0 0.0
        %925 = vmatpush1.msra.mxu0 0.0
        %926 = vmatprep.subr.mxu0 0.0
        %927 = vmatpush1.msra.mxu0 0.0
        %928 = vmatprep.subr.mxu0 0.0
        %929 = vmatpush1.msra.mxu0 0.0
        %930 = vmatprep.subr.mxu0 0.0
        %931 = vmatpush1.msra.mxu0 0.0
        %932 = vmatprep.subr.mxu0 0.0
        %933 = vmatpush1.msra.mxu0 0.0
        %934 = vmatprep.subr.mxu0 0.0
        %935 = vmatpush1.msra.mxu0 0.0
        %936 = vmatprep.mubr.f32.mxu0 0.0
        %937 = vmatmul.mubr.f32.gmra.mrb[0].mxu0 %v401
        %v938 = vpop.f32.mrb[0].mxu0
        %v939 = vadd.f32 %v864, %v938
        %v940 = vpop.f32.mrb[0].mxu0
        %941 = vmatprep.mubr.f32.mxu0 0.0
        %942 = vmatmul.mubr.f32.gmra.mrb[0].mxu0 %v406
        %v943 = vpop.f32.mrb[0].mxu0
        %v944 = vadd.f32 %v869, %v943
        %v945 = vpop.f32.mrb[0].mxu0
        %946 = vdwg.mxu0
        %947 = vmatprep.subr.mxu0 0.0
        %948 = vmatpush1.msra.mxu0 %v545
        %949 = vmatprep.subr.mxu0 0.0
        %950 = vmatpush1.msra.mxu0 %v546
        %951 = vmatprep.subr.mxu0 0.0
        %952 = vmatpush1.msra.mxu0 %v547
        %953 = vmatprep.subr.mxu0 0.0
        %954 = vmatpush1.msra.mxu0 %v548
        %955 = vmatprep.subr.mxu0 0.0
        %956 = vmatpush1.msra.mxu0 %v549
        %957 = vmatprep.subr.mxu0 0.0
        %958 = vmatpush1.msra.mxu0 %v550
        %959 = vmatprep.subr.mxu0 0.0
        %960 = vmatpush1.msra.mxu0 %v551
        %961 = vmatprep.subr.mxu0 0.0
        %962 = vmatpush1.msra.mxu0 %v552
        %963 = vmatprep.subr.mxu0 0.0
        %964 = vmatpush1.msra.mxu0 %v553
        %965 = vmatprep.subr.mxu0 0.0
        %966 = vmatpush1.msra.mxu0 %v554
        %967 = vmatprep.subr.mxu0 0.0
        %968 = vmatpush1.msra.mxu0 %v555
        %969 = vmatprep.subr.mxu0 0.0
        %970 = vmatpush1.msra.mxu0 %v556
        %971 = vmatprep.subr.mxu0 0.0
        %972 = vmatpush1.msra.mxu0 %v557
        %973 = vmatprep.subr.mxu0 0.0
        %974 = vmatpush1.msra.mxu0 %v558
        %975 = vmatprep.subr.mxu0 0.0
        %976 = vmatpush1.msra.mxu0 %v559
        %977 = vmatprep.subr.mxu0 0.0
        %978 = vmatpush1.msra.mxu0 %v560
        %979 = vmatprep.subr.mxu0 0.0
        %980 = vmatpush1.msra.mxu0 0.0
        %981 = vmatprep.subr.mxu0 0.0
        %982 = vmatpush1.msra.mxu0 0.0
        %983 = vmatprep.subr.mxu0 0.0
        %984 = vmatpush1.msra.mxu0 0.0
        %985 = vmatprep.subr.mxu0 0.0
        %986 = vmatpush1.msra.mxu0 0.0
        %987 = vmatprep.subr.mxu0 0.0
        %988 = vmatpush1.msra.mxu0 0.0
        %989 = vmatprep.subr.mxu0 0.0
        %990 = vmatpush1.msra.mxu0 0.0
        %991 = vmatprep.subr.mxu0 0.0
        %992 = vmatpush1.msra.mxu0 0.0
        %993 = vmatprep.subr.mxu0 0.0
        %994 = vmatpush1.msra.mxu0 0.0
        %995 = vmatprep.subr.mxu0 0.0
        %996 = vmatpush1.msra.mxu0 0.0
        %997 = vmatprep.subr.mxu0 0.0
        %998 = vmatpush1.msra.mxu0 0.0
        %999 = vmatprep.subr.mxu0 0.0
        %1000 = vmatpush1.msra.mxu0 0.0
        %1001 = vmatprep.subr.mxu0 0.0
        %1002 = vmatpush1.msra.mxu0 0.0
        %1003 = vmatprep.subr.mxu0 0.0
        %1004 = vmatpush1.msra.mxu0 0.0
        %1005 = vmatprep.subr.mxu0 0.0
        %1006 = vmatpush1.msra.mxu0 0.0
        %1007 = vmatprep.subr.mxu0 0.0
        %1008 = vmatpush1.msra.mxu0 0.0
        %1009 = vmatprep.subr.mxu0 0.0
        %1010 = vmatpush1.msra.mxu0 0.0
        %1011 = vmatprep.mubr.f32.mxu0 0.0
        %1012 = vmatmul.mubr.f32.gmra.mrb[0].mxu0 %v507
        %v1013 = vpop.f32.mrb[0].mxu0
        %v1014 = vadd.f32 0.0, %v1013
        %v1015 = vpop.f32.mrb[0].mxu0
        %1016 = vmatprep.mubr.f32.mxu0 0.0
        %1017 = vmatmul.mubr.f32.gmra.mrb[0].mxu0 %v510
        %v1018 = vpop.f32.mrb[0].mxu0
        %v1019 = vadd.f32 0.0, %v1018
        %v1020 = vpop.f32.mrb[0].mxu0
        %1021 = vdwg.mxu0
        %v1022 = vadd.f32 %v939, %v1014
        %v1023 = vadd.f32 %v944, %v1019
        %v1024 = vadd.f32 %v1022, %v793
        %v1025 = vadd.f32 %v1023, %v793
        %1026 = vst [vmem:[%s302] sm:$0xff] %v795
        %1027 = vst [vmem:[%s302 + $0x8] sm:$0xff] %v796
        %s1028 = scalar_lea.vmem %s302, 16 [#allocation8]
        %1029 = vst [vmem:[%s1028] sm:$0xff] %v1024
        %1030 = vst [vmem:[%s1028 + $0x8] sm:$0xff] %v1025
        %v1031 = vadd.f32 %v795, %v796
        %v1032 = vrot.slane %v1031, 4
        %v1033 = vadd.f32 %v1031, %v1032
        %v1034 = vrot.slane %v1033, 2
        %v1035 = vadd.f32 %v1033, %v1034
        %v1036 = vrot.slane %v1035, 1
        %v1037 = vadd.f32 %v1035, %v1036
        %v1038 = vadd.f32 %v1024, %v1025
        %v1039 = vrot.slane %v1038, 4
        %v1040 = vadd.f32 %v1038, %v1039
        %v1041 = vrot.slane %v1040, 2
        %v1042 = vadd.f32 %v1040, %v1041
        %v1043 = vrot.slane %v1042, 1
        %v1044 = vadd.f32 %v1042, %v1043
        %v1045 = vadd.f32 %v1037, %v1044
        %v1046 = vmul.f32 %v795, %v795
        %v1047 = vmul.f32 %v796, %v796
        %v1048 = vadd.f32 %v1046, %v1047
        %v1049 = vrot.slane %v1048, 4
        %v1050 = vadd.f32 %v1048, %v1049
        %v1051 = vrot.slane %v1050, 2
        %v1052 = vadd.f32 %v1050, %v1051
        %v1053 = vrot.slane %v1052, 1
        %v1054 = vadd.f32 %v1052, %v1053
        %v1055 = vmul.f32 %v1024, %v1024
        %v1056 = vmul.f32 %v1025, %v1025
        %v1057 = vadd.f32 %v1055, %v1056
        %v1058 = vrot.slane %v1057, 4
        %v1059 = vadd.f32 %v1057, %v1058
        %v1060 = vrot.slane %v1059, 2
        %v1061 = vadd.f32 %v1059, %v1060
        %v1062 = vrot.slane %v1061, 1
        %v1063 = vadd.f32 %v1061, %v1062
        %v1064 = vadd.f32 %v1054, %v1063
        %v1065 = vsel %vm495, %v1045, %v1064
        %1066 = vst [vmem:[%s309] sm:$0x3] %v1065
        %s1067 = sand.u32 %s146, 1
        %s1068 = scalar_lea.sflag [#allocation4], %s1067
        %s1069 = sand.u32 %s146, 1
        %s1070 = smul.addr %s1069, 32
        %s1071 = scalar_lea.vmem [#allocation8], %s1070
        %s1072 = sand.u32 %s172, 1
        %s1073 = scalar_lea.sflag [#allocation10], %s1072
        %s1074 = sand.u32 %s172, 1
        %s1075 = smul.addr %s1074, 2
        %s1076 = scalar_lea.vmem [#allocation9], %s1075
        // Predicated region
        $region53: #{tpu_custom_call.1} parent=39 // pred_check
          %p1077 = pneg %p156
        $region54: #{tpu_custom_call.1} parent=39 // pred_check_branch
          %1079 = sbr.rel (%p1077) target = $region56
        $region55: #{tpu_custom_call.1} parent=39 // pred_region
          %s1081 = ssub.s32 512, 512
          %1082 = vsyncadd %s1068, %s1081
          %s1083 = smul.addr %s28, 4
          %s1084 = smul.addr %s1083, 128
          %s1085 = scalar_lea.hbm %s5, %s1084
          %s1086 = sshll.u32 %s1071, 4
          %s1087 = int_to_ptr.vmem [resolvable:$true] %s1086
          %1092 = dma.vmem_to_hbm [thread:$0]  %s1087, 512, %s1085, %s1068, 128, 128, 8
        $region56: #{tpu_custom_call.1} parent=39 // pred_fallthru
          _
        // Predicated region
        $region57: #{tpu_custom_call.1} parent=39 // pred_check
          %p1093 = pneg %p182
        $region58: #{tpu_custom_call.1} parent=39 // pred_check_branch
          %1095 = sbr.rel (%p1093) target = $region60
        $region59: #{tpu_custom_call.1} parent=39 // pred_region
          %s1097 = ssub.s32 32, 32
          %1098 = vsyncadd %s1073, %s1097
          %s1099 = smul.addr %s28, 32
          %s1100 = scalar_lea.hbm %s6, %s1099
          %s1102 = sshll.u32 %s1076, 4
          %s1103 = int_to_ptr.vmem [resolvable:$true] %s1102
          %1105 = dma.vmem_to_hbm [thread:$0]  %s1103, 32, %s1100, %s1073
        $region60: #{tpu_custom_call.1} parent=39 // pred_fallthru
          _
      $region40: #{tpu_custom_call.1} parent=5 // pred_fallthru
        _
      %p1106 = scmp.le.s32.totalorder 2, %s23
      // Predicated region
      $region61: #{tpu_custom_call.1} parent=5 // pred_check
        %p1107 = pneg %p1106
      $region62: #{tpu_custom_call.1} parent=5 // pred_check_branch
        %1109 = sbr.rel (%p1107) target = $region64
      $region63: #{tpu_custom_call.1} parent=5 // pred_region
        %s1110 = ssub.s32 %s23, 2
        // Predicated region
        $region65: #{tpu_custom_call.1} parent=63 // pred_check
          %p1111 = pneg %p162
        $region66: #{tpu_custom_call.1} parent=63 // pred_check_branch
          %1113 = sbr.rel (%p1111) target = $region68
        $region67: #{tpu_custom_call.1} parent=63 // pred_region
          %s1114 = sand.u32 %s147, 1
          %s1115 = scalar_lea.sflag [#allocation4], %s1114
          %s1116 = sand.u32 %s147, 1
          %s1117 = smul.addr %s1116, 32
          %s1118 = scalar_lea.vmem [#allocation8], %s1117
          %1119 = dma.done %s1115, 512
        $region68: #{tpu_custom_call.1} parent=63 // pred_fallthru
          _
        // Predicated region
        $region69: #{tpu_custom_call.1} parent=63 // pred_check
          %p1120 = pneg %p188
        $region70: #{tpu_custom_call.1} parent=63 // pred_check_branch
          %1122 = sbr.rel (%p1120) target = $region72
        $region71: #{tpu_custom_call.1} parent=63 // pred_region
          %s1123 = sand.u32 %s173, 1
          %s1124 = scalar_lea.sflag [#allocation10], %s1123
          %s1125 = sand.u32 %s173, 1
          %s1126 = smul.addr %s1125, 2
          %s1127 = scalar_lea.vmem [#allocation9], %s1126
          %1128 = dma.done %s1124, 32
        $region72: #{tpu_custom_call.1} parent=63 // pred_fallthru
          _
      $region64: #{tpu_custom_call.1} parent=5 // pred_fallthru
        _
    $region6: #{tpu_custom_call.1} parent=1 // loop_footer
      %s27 = sadd.s32 1, %s23
    $region7: #{tpu_custom_call.1} parent=1 // loop_footer_branch
      %22 = sbr.rel target = $region3
    $region8: #{tpu_custom_call.1} parent=1 // loop_exit
      _
    %1129 = vsyncpa [#allocation3], 1
    %s1130 = scalar_lea.sflag [#allocation3], 1
    %1131 = vsyncpa %s1130, 1
    %1132 = vsyncpa [#allocation6], 1
    %1133 = vsyncpa [#allocation4], 1
    %s1134 = scalar_lea.sflag [#allocation4], 1
    %1135 = vsyncpa %s1134, 1
    %1136 = vsyncpa [#allocation10], 1
    %s1137 = scalar_lea.sflag [#allocation10], 1
    %1138 = vsyncpa %s1137, 1

</llo_original>
